<compile_context>
chip_gen: v7x
topology: tpu7x:2x2x1
jax: 0.10.0
libtpu: 0.0.40
codegen_flags: <defaults>
</compile_context>

<pallas_src>
import functools

import jax
import jax.numpy as jnp
from jax.experimental import pallas as pl
from jax.experimental.pallas import tpu as pltpu


def _round_up(x, m):
    return ((x + m - 1) // m) * m


def _sfdp_proj_kernel(x_ref, w_ref, scale_ref, inv_ref, *, np1):
    # x_ref:     (tm, H)          row tile of flattened query
    # w_ref:     (H, Np1 + Np2)   [W_scale.T pad | W_inv.T pad], lane-dense
    # scale_ref: (tm, Np1)        identity projection
    # inv_ref:   (tm, Np2)        softplus projection
    x = x_ref[...]
    z = jnp.dot(x, w_ref[...], preferred_element_type=jnp.float32)

    # Split at a 128-aligned lane boundary (tile-aligned -> no VMEM copy).
    z_scale = z[:, :np1]
    z_inv = z[:, np1:]

    # Numerically safe softplus only on the inv half: log1p(exp(z)) for
    # z <= 20, z otherwise (jnp.where evaluates both branches, so clamp exp).
    sp = jnp.where(z_inv > 20.0,
                   z_inv,
                   jnp.log1p(jnp.exp(jnp.minimum(z_inv, 20.0))))

    scale_ref[...] = z_scale.astype(scale_ref.dtype)
    inv_ref[...] = sp.astype(inv_ref.dtype)


def prepare_weights(w_scale, w_inv):
    """One-time weight prep (hoist out of the per-call path).

    w_scale, w_inv: (N, H) like torch.nn.Linear.weight.
    Returns the fused lane-dense slab (H, Np1+Np2) and the padded widths.
    """
    n_scale, h = w_scale.shape
    n_inv = w_inv.shape[0]
    np1 = _round_up(n_scale, 128)
    np2 = _round_up(n_inv, 128)
    ws = w_scale.T  # (H, N)
    wi = w_inv.T
    if np1 > n_scale:
        ws = jnp.pad(ws, ((0, 0), (0, np1 - n_scale)))
    if np2 > n_inv:
        wi = jnp.pad(wi, ((0, 0), (0, np2 - n_inv)))
    w_cat = jnp.concatenate([ws, wi], axis=1)  # (H, Np1 + Np2)
    return w_cat, np1, np2


def sfdp_projections(query, w_cat, np1, np2, n_out, *, tm=None):
    """query: (B, S, H); w_cat: prepared (H, Np1+Np2) weight slab."""
    B, S, H = query.shape
    M = B * S
    n_total = np1 + np2
    x = query.reshape(M, H)

    # Row tile: >= 2 grid steps for mid/large M (megacore sharding on v7x),
    # capped at 512 rows; always a multiple of 8 (f32 sublane).
    if tm is None:
        tm = min(512, max(8, _round_up(max(M // 8, 1), 8)))
    tm = max(8, (tm // 8) * 8)

    # Keep double-buffered x + outputs + resident weight under ~48 MiB
    # (safe on v7x's 64 MiB physical VMEM); shrink tm if necessary.
    def vmem_est(t):
        return 4 * (2 * t * H + 2 * H * n_total + 2 * t * n_total)

    budget = 48 * 1024 * 1024
    while tm > 8 and vmem_est(tm) > budget:
        tm = max(8, (tm // 2 // 8) * 8)
    vmem_limit = int(min(max(int(vmem_est(tm) * 1.3), 16 * 1024 * 1024),
                         64 * 1024 * 1024))

    grid = (pl.cdiv(M, tm),)  # ragged last block handled by Pallas masking

    scale_p, inv_p = pl.pallas_call(
        functools.partial(_sfdp_proj_kernel, np1=np1),
        out_shape=(
            jax.ShapeDtypeStruct((M, np1), query.dtype),
            jax.ShapeDtypeStruct((M, np2), query.dtype),
        ),
        grid_spec=pltpu.PrefetchScalarGridSpec(
            num_scalar_prefetch=0,
            grid=grid,
            in_specs=[
                pl.BlockSpec((tm, H), lambda i: (i, 0)),
                pl.BlockSpec((H, n_total), lambda i: (0, 0)),
            ],
            out_specs=[
                pl.BlockSpec((tm, np1), lambda i: (i, 0)),
                pl.BlockSpec((tm, np2), lambda i: (i, 0)),
            ],
        ),
        compiler_params=pltpu.CompilerParams(
            dimension_semantics=("parallel",),
            vmem_limit_bytes=vmem_limit,
        ),
    )(x, w_cat)

    # Only slice if N is not already a lane multiple (free in the common case).
    scale = scale_p if np1 == n_out else scale_p[:, :n_out]
    inv = inv_p if np2 == n_out else inv_p[:, :n_out]
    return scale.reshape(B, S, n_out), inv.reshape(B, S, n_out)


if __name__ == "__main__":
    # Small shapes consistent with the module: query (B, S, hidden)
    B, S, hidden, num_hiddens = 2, 8, 32, 32

    key = jax.random.PRNGKey(0)
    kq, kk, kv, kw1, kw2 = jax.random.split(key, 5)

    query = jax.random.normal(kq, (B, S, hidden), dtype=jnp.float32)
    # key / value / attn_mask are accepted by the torch forward but unused
    key_t = jax.random.normal(kk, (B, S, hidden), dtype=jnp.float32)
    value = jax.random.normal(kv, (B, S, hidden), dtype=jnp.float32)
    attn_mask = jnp.zeros((B, S, S), dtype=jnp.float32)

    # Deterministic parameter init (torch.nn.Linear(hidden, num_hiddens, bias=False))
    bound = 1.0 / jnp.sqrt(hidden)
    w_scale = jax.random.uniform(kw1, (num_hiddens, hidden),
                                 minval=-bound, maxval=bound, dtype=jnp.float32)
    w_inv = jax.random.uniform(kw2, (num_hiddens, hidden),
                               minval=-bound, maxval=bound, dtype=jnp.float32)

    # One-time weight prep (outside the per-call path).
    w_cat, np1, np2 = prepare_weights(w_scale, w_inv)

    scale_factor, inv_scale_factor = sfdp_projections(
        query, w_cat, np1, np2, num_hiddens)
    jax.block_until_ready((scale_factor, inv_scale_factor))

    # Reference check in plain JAX
    ref_scale = jnp.einsum("bsh,nh->bsn", query, w_scale)
    ref_inv = jnp.log1p(jnp.exp(jnp.einsum("bsh,nh->bsn", query, w_inv)))
    assert jnp.allclose(scale_factor, ref_scale, atol=1e-5, rtol=1e-5)
    assert jnp.allclose(inv_scale_factor, ref_inv, atol=1e-5, rtol=1e-5)

    # TODO(synk): the torch forward has no `return` and never uses key/value/
    # attn_mask or dropout; only the two projections + softplus are computed.
    print("KERNEL_OK")
</pallas_src>

<mosaic_0001>
module attributes {stable_mosaic.version = 11 : i64} {
  func.func @_sfdp_proj_kernel(%arg0: i32, %arg1: memref<8x32xf32, #tpu.memory_space<vmem>>, %arg2: memref<32x256xf32, #tpu.memory_space<vmem>>, %arg3: memref<8x128xf32, #tpu.memory_space<vmem>>, %arg4: memref<8x128xf32, #tpu.memory_space<vmem>>) attributes {dimension_semantics = [#tpu.dimension_semantics<parallel>], iteration_bounds = array<i64: 2>, scalar_prefetch = 0 : i64, scratch_operands = 0 : i64, tpu.core_type = #tpu.core_type<tc>, window_params = [{transform_indices = @transform_0, window_bounds = array<i64: 8, 32>}, {pipeline_mode = #tpu.pipeline_mode<synchronous>, transform_indices = @transform_1, window_bounds = array<i64: 32, 256>}, {transform_indices = @transform_2, window_bounds = array<i64: 8, 128>}, {transform_indices = @transform_3, window_bounds = array<i64: 8, 128>}]} {
    %c0 = arith.constant 0 : index
    %c0_0 = arith.constant 0 : index
    %0 = vector.load %arg1[%c0, %c0_0] : memref<8x32xf32, #tpu.memory_space<vmem>>, vector<8x32xf32>
    %c0_1 = arith.constant 0 : index
    %c0_2 = arith.constant 0 : index
    %1 = vector.load %arg2[%c0_1, %c0_2] : memref<32x256xf32, #tpu.memory_space<vmem>>, vector<32x256xf32>
    %cst = arith.constant dense<0.000000e+00> : vector<8x256xf32>
    %2 = tpu.matmul %0, %1, %cst {dimension_numbers = #tpu.dot_dimension_numbers<[1], [0], [0], [1], [0, 0, 1, 1], [], []>} : vector<8x32xf32>, vector<32x256xf32>, vector<8x256xf32> -> vector<8x256xf32>
    %3 = vector.extract_strided_slice %2 {offsets = [0, 0], sizes = [8, 128], strides = [1, 1]} : vector<8x256xf32> to vector<8x128xf32>
    %4 = vector.extract_strided_slice %2 {offsets = [0, 128], sizes = [8, 128], strides = [1, 1]} : vector<8x256xf32> to vector<8x128xf32>
    %cst_3 = arith.constant 2.000000e+01 : f32
    %5 = vector.broadcast %cst_3 : f32 to vector<8x128xf32>
    %6 = arith.cmpf ogt, %4, %5 : vector<8x128xf32>
    %cst_4 = arith.constant 2.000000e+01 : f32
    %7 = vector.broadcast %cst_4 : f32 to vector<8x128xf32>
    %8 = arith.minimumf %4, %7 : vector<8x128xf32>
    %9 = math.exp %8 : vector<8x128xf32>
    %10 = math.log1p %9 : vector<8x128xf32>
    %11 = arith.select %6, %4, %10 : vector<8x128xi1>, vector<8x128xf32>
    %c0_5 = arith.constant 0 : index
    %c0_6 = arith.constant 0 : index
    %12 = vector.load %arg3[%c0_5, %c0_6] : memref<8x128xf32, #tpu.memory_space<vmem>>, vector<8x128xf32>
    tpu.vector_store %arg3[%c0_5, %c0_6], %3 {strides = array<i32>} : memref<8x128xf32, #tpu.memory_space<vmem>>, vector<8x128xf32>,
    %c0_7 = arith.constant 0 : index
    %c0_8 = arith.constant 0 : index
    %13 = vector.load %arg4[%c0_7, %c0_8] : memref<8x128xf32, #tpu.memory_space<vmem>>, vector<8x128xf32>
    tpu.vector_store %arg4[%c0_7, %c0_8], %11 {strides = array<i32>} : memref<8x128xf32, #tpu.memory_space<vmem>>, vector<8x128xf32>,
    return
  }
  func.func @transform_0(%arg0: i32) -> (i32, i32) {
    %c0_i32 = arith.constant 0 : i32
    %c0_i32_0 = arith.constant 0 : i32
    return %arg0, %c0_i32 : i32, i32
  }
  func.func @transform_1(%arg0: i32) -> (i32, i32) {
    %c0_i32 = arith.constant 0 : i32
    %c0_i32_0 = arith.constant 0 : i32
    %c0_i32_1 = arith.constant 0 : i32
    return %c0_i32, %c0_i32_0 : i32, i32
  }
  func.func @transform_2(%arg0: i32) -> (i32, i32) {
    %c0_i32 = arith.constant 0 : i32
    %c0_i32_0 = arith.constant 0 : i32
    return %arg0, %c0_i32 : i32, i32
  }
  func.func @transform_3(%arg0: i32) -> (i32, i32) {
    %c0_i32 = arith.constant 0 : i32
    %c0_i32_0 = arith.constant 0 : i32
    return %arg0, %c0_i32 : i32, i32
  }
}

</mosaic_0001>

<llo_original>
// kernel: tpu_custom_call.1
$region0: #{tpu_custom_call.1}
  #allocation0 [shape = 'u32[]', space=smem, size = 0x4, offset = 0x4, fixed_abs, tag = 'smem constant byte address 0x4 - core index']
  #allocation1 [shape = 'u32[144,128]{1,0:T(1,128)}', space=vmem, size = 0x12000, scoped, tag = 'internal scratch']
  %s0 = inlined_call_operand.hbm [shape: f32[16,32], index: 0, kind: input, shape index: {}]
  %s1 = inlined_call_operand.hbm [shape: f32[32,256], index: 1, kind: input, shape index: {}]
  %s2 = inlined_call_operand.hbm [shape: f32[16,128], index: 2, kind: output, shape index: {0}]
  %s3 = inlined_call_operand.hbm [shape: f32[16,128], index: 3, kind: output, shape index: {1}]
  %4 = xla_tuple %s2, %s3
  %s5 = sld [smem:[#allocation0]]
  $region57: #{tpu_custom_call.1} parent=0
    _
  %s7 = ssub.s32 1, %s5
  %s8 = scalar_select 0, %s7, %s5
  $region1: #{tpu_custom_call.1} parent=0
    #allocation2 [shape = 'u8[8192]{0}', space=vmem, size = 0x2000, scoped, tag = 'input window, operand 0']
    #allocation3 [shape = 's32[2]{0}', space=sflag, size = 0x8, scoped, tag = 'scoped memory for tpu_custom_call.1']
    #allocation4 [shape = 's32[2]{0}', space=sflag, size = 0x8, scoped, tag = 'scoped memory for tpu_custom_call.1']
    #allocation5 [shape = 'u8[32768]{0}', space=vmem, size = 0x8000, scoped, tag = 'input window, operand 1, single buffered']
    #allocation6 [shape = 's32[1]{0}', space=sflag, size = 0x4, scoped, tag = 'scoped memory for tpu_custom_call.1']
    #allocation7 [shape = 'u8[8192]{0}', space=vmem, size = 0x2000, scoped, tag = 'output window, operand 0']
    #allocation8 [shape = 'u8[8192]{0}', space=vmem, size = 0x2000, scoped, tag = 'output window, operand 1']
    #allocation9 [shape = 's32[2]{0}', space=sflag, size = 0x8, scoped, tag = 'scoped memory for tpu_custom_call.1']
    %9 = vsyncpa [#allocation3], 0
    %s10 = scalar_lea.sflag [#allocation3], 1
    %11 = vsyncpa %s10, 0
    %12 = vsyncpa [#allocation6], 0
    %13 = vsyncpa [#allocation4], 0
    %s14 = scalar_lea.sflag [#allocation4], 1
    %15 = vsyncpa %s14, 0
    %16 = vsyncpa [#allocation9], 0
    %s17 = scalar_lea.sflag [#allocation9], 1
    %18 = vsyncpa %s17, 0
    loop: start=0, step=1, limit=4
    $region2: #{tpu_custom_call.1} parent=1 // loop_pre_header
      _
    $region3: #{tpu_custom_call.1} parent=1 // loop_header
      %s20 = sphi 0, %s24
      %p21 = scmp.ge.s32.totalorder %s20, 4
      %s30 = sphi 0, %s32
      %s33 = sphi 0, %s30
      %s34 = sphi 0, %s33
      %s50 = sphi 0, %s34
      %s54 = sphi 0, %s54
      %s56 = sphi 0, %s54
      %s57 = sphi 0, %s56
      %s71 = sphi 0, %s57
      %s77 = sphi 0, %s79
      %s80 = sphi 0, %s77
      %s81 = sphi 0, %s80
      %s97 = sphi 0, %s81
      %s103 = sphi 0, %s105
      %s106 = sphi 0, %s103
      %s107 = sphi 0, %s106
      %s123 = sphi 0, %s107
    $region4: #{tpu_custom_call.1} parent=1 // loop_header_branch
      %23 = sbr.rel (%p21) target = $region8
    $region5: #{tpu_custom_call.1} parent=1 // loop_body
      %s25 = ssub.s32 %s20, 1
      %s26 = ssub.s32 %s20, 2
      %s27 = sadd.s32 %s20, 1
      %s28 = ssub.s32 %s20, %s27
      %p29 = scmp.eq.s32.totalorder %s28, 0
      %s31 = sadd.s32 %s30, 1
      %s32 = scalar_select %p29, %s30, %s31
      %p35 = pneg %p29
      %p36 = scmp.eq.s32.totalorder %s20, 1
      %p37 = por %p35, %p36
      %p38 = scmp.ne.s32.totalorder %s30, %s33
      %p39 = scmp.eq.s32.totalorder %s20, 0
      %p40 = por %p38, %p39
      %p41 = scmp.ne.s32.totalorder %s30, %s33
      %p42 = scmp.eq.s32.totalorder %s25, 1
      %p43 = por %p41, %p42
      %p44 = scmp.ne.s32.totalorder %s33, %s34
      %p45 = scmp.eq.s32.totalorder %s25, 0
      %p46 = por %p44, %p45
      %p47 = scmp.ne.s32.totalorder %s33, %s34
      %p48 = scmp.eq.s32.totalorder %s26, 1
      %p49 = por %p47, %p48
      %p51 = scmp.ne.s32.totalorder %s34, %s50
      %p52 = scmp.eq.s32.totalorder %s26, 0
      %p53 = por %p51, %p52
      %s55 = sadd.s32 %s54, 1
      %p58 = scmp.eq.s32.totalorder %s20, 1
      %p59 = scmp.ne.s32.totalorder %s54, %s56
      %p60 = scmp.eq.s32.totalorder %s20, 0
      %p61 = por %p59, %p60
      %p62 = scmp.ne.s32.totalorder %s54, %s56
      %p63 = scmp.eq.s32.totalorder %s25, 1
      %p64 = por %p62, %p63
      %p65 = scmp.ne.s32.totalorder %s56, %s57
      %p66 = scmp.eq.s32.totalorder %s25, 0
      %p67 = por %p65, %p66
      %p68 = scmp.ne.s32.totalorder %s56, %s57
      %p69 = scmp.eq.s32.totalorder %s26, 1
      %p70 = por %p68, %p69
      %p72 = scmp.ne.s32.totalorder %s57, %s71
      %p73 = scmp.eq.s32.totalorder %s26, 0
      %p74 = por %p72, %p73
      %s75 = ssub.s32 %s20, %s27
      %p76 = scmp.eq.s32.totalorder %s75, 0
      %s78 = sadd.s32 %s77, 1
      %s79 = scalar_select %p76, %s77, %s78
      %p82 = pneg %p76
      %p83 = scmp.eq.s32.totalorder %s20, 1
      %p84 = por %p82, %p83
      %p85 = scmp.ne.s32.totalorder %s77, %s80
      %p86 = scmp.eq.s32.totalorder %s20, 0
      %p87 = por %p85, %p86
      %p88 = scmp.ne.s32.totalorder %s77, %s80
      %p89 = scmp.eq.s32.totalorder %s25, 1
      %p90 = por %p88, %p89
      %p91 = scmp.ne.s32.totalorder %s80, %s81
      %p92 = scmp.eq.s32.totalorder %s25, 0
      %p93 = por %p91, %p92
      %p94 = scmp.ne.s32.totalorder %s80, %s81
      %p95 = scmp.eq.s32.totalorder %s26, 1
      %p96 = por %p94, %p95
      %p98 = scmp.ne.s32.totalorder %s81, %s97
      %p99 = scmp.eq.s32.totalorder %s26, 0
      %p100 = por %p98, %p99
      %s101 = ssub.s32 %s20, %s27
      %p102 = scmp.eq.s32.totalorder %s101, 0
      %s104 = sadd.s32 %s103, 1
      %s105 = scalar_select %p102, %s103, %s104
      %p108 = pneg %p102
      %p109 = scmp.eq.s32.totalorder %s20, 1
      %p110 = por %p108, %p109
      %p111 = scmp.ne.s32.totalorder %s103, %s106
      %p112 = scmp.eq.s32.totalorder %s20, 0
      %p113 = por %p111, %p112
      %p114 = scmp.ne.s32.totalorder %s103, %s106
      %p115 = scmp.eq.s32.totalorder %s25, 1
      %p116 = por %p114, %p115
      %p117 = scmp.ne.s32.totalorder %s106, %s107
      %p118 = scmp.eq.s32.totalorder %s25, 0
      %p119 = por %p117, %p118
      %p120 = scmp.ne.s32.totalorder %s106, %s107
      %p121 = scmp.eq.s32.totalorder %s26, 1
      %p122 = por %p120, %p121
      %p124 = scmp.ne.s32.totalorder %s107, %s123
      %p125 = scmp.eq.s32.totalorder %s26, 0
      %p126 = por %p124, %p125
      %p127 = scmp.le.s32.totalorder 1, %s20
      %p128 = scmp.lt.s32.totalorder %s20, 3
      %p129 = pnand %p127, %p128
      %p130 = pneg %p129
      // Predicated region
      $region9: #{tpu_custom_call.1} parent=5 // pred_check
        _
      $region10: #{tpu_custom_call.1} parent=5 // pred_check_branch
        %132 = sbr.rel (%p129) target = $region12
      $region11: #{tpu_custom_call.1} parent=5 // pred_region
        %s133 = ssub.s32 %s20, 1
        // Predicated region
        $region13: #{tpu_custom_call.1} parent=11 // pred_check
          %p134 = pneg %p67
        $region14: #{tpu_custom_call.1} parent=11 // pred_check_branch
          %136 = sbr.rel (%p134) target = $region16
        $region15: #{tpu_custom_call.1} parent=11 // pred_region
          %s138 = ssub.s32 1024, 1024
          %139 = vsyncadd [#allocation6], %s138
          %s140 = sshll.u32 [#allocation5], 4
          %s141 = int_to_ptr.vmem [resolvable:$true] %s140
          %146 = dma.hbm_to_vmem [thread:$0]  %s1, 1024, %s141, [#allocation6], 256, 256, 16
        $region16: #{tpu_custom_call.1} parent=11 // pred_fallthru
          _
      $region12: #{tpu_custom_call.1} parent=5 // pred_fallthru
        _
      %p147 = scmp.lt.s32.totalorder %s20, 2
      // Predicated region
      $region17: #{tpu_custom_call.1} parent=5 // pred_check
        %p148 = pneg %p147
      $region18: #{tpu_custom_call.1} parent=5 // pred_check_branch
        %150 = sbr.rel (%p148) target = $region20
      $region19: #{tpu_custom_call.1} parent=5 // pred_region
        // Predicated region
        $region21: #{tpu_custom_call.1} parent=19 // pred_check
          %p151 = pneg %p40
        $region22: #{tpu_custom_call.1} parent=19 // pred_check_branch
          %153 = sbr.rel (%p151) target = $region24
        $region23: #{tpu_custom_call.1} parent=19 // pred_region
          %s154 = sand.u32 %s30, 1
          %s155 = scalar_lea.sflag [#allocation3], %s154
          %s156 = sand.u32 %s30, 1
          %s157 = smul.addr %s156, 8
          %s158 = scalar_lea.vmem [#allocation2], %s157
          %s160 = ssub.s32 128, 128
          %161 = vsyncadd %s155, %s160
          %s162 = smul.addr %s20, 128
          %s163 = scalar_lea.hbm %s0, %s162
          %s165 = sshll.u32 %s158, 4
          %s166 = int_to_ptr.vmem [resolvable:$true] %s165
          %168 = dma.hbm_to_vmem [thread:$0]  %s163, 128, %s166, %s155
        $region24: #{tpu_custom_call.1} parent=19 // pred_fallthru
          _
      $region20: #{tpu_custom_call.1} parent=5 // pred_fallthru
        _
      %p169 = scmp.le.s32.totalorder 1, %s20
      %p170 = scmp.lt.s32.totalorder %s20, 3
      %p171 = pnand %p169, %p170
      %p172 = pneg %p171
      // Predicated region
      $region25: #{tpu_custom_call.1} parent=5 // pred_check
        _
      $region26: #{tpu_custom_call.1} parent=5 // pred_check_branch
        %174 = sbr.rel (%p171) target = $region28
      $region27: #{tpu_custom_call.1} parent=5 // pred_region
        %s175 = ssub.s32 %s20, 1
        %s176 = sand.u32 %s33, 1
        %s177 = scalar_lea.sflag [#allocation3], %s176
        %s178 = sand.u32 %s33, 1
        %s179 = smul.addr %s178, 8
        %s180 = scalar_lea.vmem [#allocation2], %s179
        // Predicated region
        $region29: #{tpu_custom_call.1} parent=27 // pred_check
          %p181 = pneg %p46
        $region30: #{tpu_custom_call.1} parent=27 // pred_check_branch
          %183 = sbr.rel (%p181) target = $region32
        $region31: #{tpu_custom_call.1} parent=27 // pred_region
          %184 = dma.done %s177, 128
        $region32: #{tpu_custom_call.1} parent=27 // pred_fallthru
          _
        // Predicated region
        $region33: #{tpu_custom_call.1} parent=27 // pred_check
          %p185 = pneg %p67
        $region34: #{tpu_custom_call.1} parent=27 // pred_check_branch
          %187 = sbr.rel (%p185) target = $region36
        $region35: #{tpu_custom_call.1} parent=27 // pred_region
          %188 = dma.done [#allocation6], 1024
        $region36: #{tpu_custom_call.1} parent=27 // pred_fallthru
          _
        %s189 = sand.u32 %s33, 1
        %s190 = scalar_lea.sflag [#allocation3], %s189
        %s191 = sand.u32 %s33, 1
        %s192 = smul.addr %s191, 8
        %s193 = scalar_lea.vmem [#allocation2], %s192
        %p194 = pneg %p46
        %p195 = pneg %p43
        %p196 = pneg %p67
        %p197 = pneg %p64
        %p198 = pneg %p93
        %p199 = pneg %p90
        %s200 = sand.u32 %s80, 1
        %s201 = scalar_lea.sflag [#allocation4], %s200
        %s202 = sand.u32 %s80, 1
        %s203 = smul.addr %s202, 8
        %s204 = scalar_lea.vmem [#allocation7], %s203
        %p205 = pneg %p119
        %p206 = pneg %p116
        %s207 = sand.u32 %s106, 1
        %s208 = scalar_lea.sflag [#allocation9], %s207
        %s209 = sand.u32 %s106, 1
        %s210 = smul.addr %s209, 8
        %s211 = scalar_lea.vmem [#allocation8], %s210
        %v212 = vld [vmem:[%s180] sm:$0xff]
        %v213 = vld [vmem:[#allocation5] sm:$0xff]
        %v214 = vld [vmem:[#allocation5 + $0x8] sm:$0xff]
        %v215 = vld [vmem:[#allocation5 + $0x10] sm:$0xff]
        %v216 = vld [vmem:[#allocation5 + $0x18] sm:$0xff]
        %v217 = vld [vmem:[#allocation5 + $0x20] sm:$0xff]
        %v218 = vld [vmem:[#allocation5 + $0x28] sm:$0xff]
        %v219 = vld [vmem:[#allocation5 + $0x30] sm:$0xff]
        %v220 = vld [vmem:[#allocation5 + $0x38] sm:$0xff]
        %vm221 = vcmask 261120
        %v223 = vsel %vm221, %v212, 0
        %225 = vmatprep.subr.mxu0 %v214
        %226 = vmatpush1.msra.mxu0 %v213
        %227 = vmatprep.subr.mxu0 %v216
        %228 = vmatpush1.msra.mxu0 %v215
        %229 = vmatprep.subr.mxu0 %v218
        %230 = vmatpush1.msra.mxu0 %v217
        %231 = vmatprep.subr.mxu0 %v220
        %232 = vmatpush1.msra.mxu0 %v219
        %233 = vmatprep.subr.mxu0 0.0
        %234 = vmatpush1.msra.mxu0 0.0
        %235 = vmatprep.subr.mxu0 0.0
        %236 = vmatpush1.msra.mxu0 0.0
        %237 = vmatprep.subr.mxu0 0.0
        %238 = vmatpush1.msra.mxu0 0.0
        %239 = vmatprep.subr.mxu0 0.0
        %240 = vmatpush1.msra.mxu0 0.0
        %241 = vmatprep.subr.mxu0 0.0
        %242 = vmatpush1.msra.mxu0 0.0
        %243 = vmatprep.subr.mxu0 0.0
        %244 = vmatpush1.msra.mxu0 0.0
        %245 = vmatprep.subr.mxu0 0.0
        %246 = vmatpush1.msra.mxu0 0.0
        %247 = vmatprep.subr.mxu0 0.0
        %248 = vmatpush1.msra.mxu0 0.0
        %249 = vmatprep.subr.mxu0 0.0
        %250 = vmatpush1.msra.mxu0 0.0
        %251 = vmatprep.subr.mxu0 0.0
        %252 = vmatpush1.msra.mxu0 0.0
        %253 = vmatprep.subr.mxu0 0.0
        %254 = vmatpush1.msra.mxu0 0.0
        %255 = vmatprep.subr.mxu0 0.0
        %256 = vmatpush1.msra.mxu0 0.0
        %257 = vmatprep.subr.mxu0 0.0
        %258 = vmatpush1.msra.mxu0 0.0
        %259 = vmatprep.subr.mxu0 0.0
        %260 = vmatpush1.msra.mxu0 0.0
        %261 = vmatprep.subr.mxu0 0.0
        %262 = vmatpush1.msra.mxu0 0.0
        %263 = vmatprep.subr.mxu0 0.0
        %264 = vmatpush1.msra.mxu0 0.0
        %265 = vmatprep.subr.mxu0 0.0
        %266 = vmatpush1.msra.mxu0 0.0
        %267 = vmatprep.subr.mxu0 0.0
        %268 = vmatpush1.msra.mxu0 0.0
        %269 = vmatprep.subr.mxu0 0.0
        %270 = vmatpush1.msra.mxu0 0.0
        %271 = vmatprep.subr.mxu0 0.0
        %272 = vmatpush1.msra.mxu0 0.0
        %273 = vmatprep.subr.mxu0 0.0
        %274 = vmatpush1.msra.mxu0 0.0
        %275 = vmatprep.subr.mxu0 0.0
        %276 = vmatpush1.msra.mxu0 0.0
        %277 = vmatprep.subr.mxu0 0.0
        %278 = vmatpush1.msra.mxu0 0.0
        %279 = vmatprep.subr.mxu0 0.0
        %280 = vmatpush1.msra.mxu0 0.0
        %281 = vmatprep.subr.mxu0 0.0
        %282 = vmatpush1.msra.mxu0 0.0
        %283 = vmatprep.subr.mxu0 0.0
        %284 = vmatpush1.msra.mxu0 0.0
        %285 = vmatprep.subr.mxu0 0.0
        %286 = vmatpush1.msra.mxu0 0.0
        %287 = vmatprep.subr.mxu0 0.0
        %288 = vmatpush1.msra.mxu0 0.0
        %289 = vmatprep.mubr.f32.mxu0 0.0
        %290 = vmatmul.mubr.f32.gmra.mrb[0].mxu0 %v223
        %v291 = vpop.f32.mrb[0].mxu0
        %v292 = vadd.f32 0.0, %v291
        %v293 = vpop.f32.mrb[0].mxu0
        %v294 = vadd.f32 0.0, %v293
        %295 = vdwg.mxu0
        %vm296 = vcmp.gt.f32.partialorder %v294, 20.0
        %v297 = vmin.f32 %v294, 20.0
        %v298 = vmul.f32 %v297, 1.442695
        %v299 = vpow.pop %v298
        %v300 = vadd.f32 %v299, 1.0
        %v301 = vlog2.pop %v300
        %v302 = vmul.f32 %v301, 0.6931472
        %v303 = vmul.f32 -0.5, %v299
        %v304 = vadd.f32 %v303, 1.0
        %v305 = vmul.f32 %v304, %v299
        %v306 = vand.u32 2147483647, %v299
        %vm307 = vcmp.lt.f32.partialorder %v306, 0.0004427343
        %v308 = vsel %vm307, %v305, %v302
        %v309 = vsel %vm296, %v294, %v308
        %310 = vst [vmem:[%s204] sm:$0xff] %v292
        %311 = vst [vmem:[%s211] sm:$0xff] %v309
        %s312 = sand.u32 %s80, 1
        %s313 = scalar_lea.sflag [#allocation4], %s312
        %s314 = sand.u32 %s80, 1
        %s315 = smul.addr %s314, 8
        %s316 = scalar_lea.vmem [#allocation7], %s315
        %s317 = sand.u32 %s106, 1
        %s318 = scalar_lea.sflag [#allocation9], %s317
        %s319 = sand.u32 %s106, 1
        %s320 = smul.addr %s319, 8
        %s321 = scalar_lea.vmem [#allocation8], %s320
        // Predicated region
        $region37: #{tpu_custom_call.1} parent=27 // pred_check
          %p322 = pneg %p90
        $region38: #{tpu_custom_call.1} parent=27 // pred_check_branch
          %324 = sbr.rel (%p322) target = $region40
        $region39: #{tpu_custom_call.1} parent=27 // pred_region
          %s326 = ssub.s32 128, 128
          %327 = vsyncadd %s313, %s326
          %s328 = smul.addr %s25, 128
          %s329 = scalar_lea.hbm %s2, %s328
          %s331 = sshll.u32 %s316, 4
          %s332 = int_to_ptr.vmem [resolvable:$true] %s331
          %334 = dma.vmem_to_hbm [thread:$0]  %s332, 128, %s329, %s313
        $region40: #{tpu_custom_call.1} parent=27 // pred_fallthru
          _
        // Predicated region
        $region41: #{tpu_custom_call.1} parent=27 // pred_check
          %p335 = pneg %p116
        $region42: #{tpu_custom_call.1} parent=27 // pred_check_branch
          %337 = sbr.rel (%p335) target = $region44
        $region43: #{tpu_custom_call.1} parent=27 // pred_region
          %s339 = ssub.s32 128, 128
          %340 = vsyncadd %s318, %s339
          %s341 = smul.addr %s25, 128
          %s342 = scalar_lea.hbm %s3, %s341
          %s344 = sshll.u32 %s321, 4
          %s345 = int_to_ptr.vmem [resolvable:$true] %s344
          %347 = dma.vmem_to_hbm [thread:$0]  %s345, 128, %s342, %s318
        $region44: #{tpu_custom_call.1} parent=27 // pred_fallthru
          _
      $region28: #{tpu_custom_call.1} parent=5 // pred_fallthru
        _
      %p348 = scmp.le.s32.totalorder 2, %s20
      // Predicated region
      $region45: #{tpu_custom_call.1} parent=5 // pred_check
        %p349 = pneg %p348
      $region46: #{tpu_custom_call.1} parent=5 // pred_check_branch
        %351 = sbr.rel (%p349) target = $region48
      $region47: #{tpu_custom_call.1} parent=5 // pred_region
        %s352 = ssub.s32 %s20, 2
        // Predicated region
        $region49: #{tpu_custom_call.1} parent=47 // pred_check
          %p353 = pneg %p96
        $region50: #{tpu_custom_call.1} parent=47 // pred_check_branch
          %355 = sbr.rel (%p353) target = $region52
        $region51: #{tpu_custom_call.1} parent=47 // pred_region
          %s356 = sand.u32 %s81, 1
          %s357 = scalar_lea.sflag [#allocation4], %s356
          %s358 = sand.u32 %s81, 1
          %s359 = smul.addr %s358, 8
          %s360 = scalar_lea.vmem [#allocation7], %s359
          %361 = dma.done %s357, 128
        $region52: #{tpu_custom_call.1} parent=47 // pred_fallthru
          _
        // Predicated region
        $region53: #{tpu_custom_call.1} parent=47 // pred_check
          %p362 = pneg %p122
        $region54: #{tpu_custom_call.1} parent=47 // pred_check_branch
          %364 = sbr.rel (%p362) target = $region56
        $region55: #{tpu_custom_call.1} parent=47 // pred_region
          %s365 = sand.u32 %s107, 1
          %s366 = scalar_lea.sflag [#allocation9], %s365
          %s367 = sand.u32 %s107, 1
          %s368 = smul.addr %s367, 8
          %s369 = scalar_lea.vmem [#allocation8], %s368
          %370 = dma.done %s366, 128
        $region56: #{tpu_custom_call.1} parent=47 // pred_fallthru
          _
      $region48: #{tpu_custom_call.1} parent=5 // pred_fallthru
        _
    $region6: #{tpu_custom_call.1} parent=1 // loop_footer
      %s24 = sadd.s32 1, %s20
    $region7: #{tpu_custom_call.1} parent=1 // loop_footer_branch
      %19 = sbr.rel target = $region3
    $region8: #{tpu_custom_call.1} parent=1 // loop_exit
      _
    %371 = vsyncpa [#allocation3], 1
    %s372 = scalar_lea.sflag [#allocation3], 1
    %373 = vsyncpa %s372, 1
    %374 = vsyncpa [#allocation6], 1
    %375 = vsyncpa [#allocation4], 1
    %s376 = scalar_lea.sflag [#allocation4], 1
    %377 = vsyncpa %s376, 1
    %378 = vsyncpa [#allocation9], 1
    %s379 = scalar_lea.sflag [#allocation9], 1
    %380 = vsyncpa %s379, 1

</llo_original>
